<compile_context>
chip_gen: v7x
topology: tpu7x:2x2x1
jax: 0.10.0
libtpu: 0.0.40
codegen_flags: <defaults>
</compile_context>

<pallas_src>
import functools

import numpy as np
import jax
import jax.numpy as jnp
from jax.experimental import pallas as pl
from jax.experimental.pallas import tpu as pltpu

_LANE = 128      # lane width (last dim alignment)
_SUBLANE = 8     # f32 sublane minimum (second-to-last dim alignment)


def _round_up(x, m):
    return ((x + m - 1) // m) * m


# ----------------------------------------------------------------------------
# Kernels
# ----------------------------------------------------------------------------
def _linear_kernel_single_k(x_ref, w_ref, b_ref, o_ref):
    """Whole-K tile: one MXU pass + fused bias, single lane-dense store."""
    o_ref[...] = (jnp.dot(x_ref[...], w_ref[...],
                          preferred_element_type=jnp.float32)
                  + b_ref[...])


def _linear_kernel_k_reduce(x_ref, w_ref, b_ref, o_ref):
    """K-split tile: accumulate directly into the resident f32 output block.

    The output BlockSpec ignores the K grid axis, so o_ref stays in VMEM for
    all K steps; initializing it with the bias removes the finalize branch.
    """
    @pl.when(pl.program_id(2) == 0)
    def _():
        o_ref[...] = jnp.broadcast_to(b_ref[...], o_ref.shape)

    o_ref[...] += jnp.dot(x_ref[...], w_ref[...],
                          preferred_element_type=jnp.float32)


# ----------------------------------------------------------------------------
# pallas_call wrapper (padded shapes, static tile plan)
# ----------------------------------------------------------------------------
@functools.partial(jax.jit, static_argnames=("tm", "tn", "tk"))
def _linear_padded(x_p, w_p, b_p, *, tm, tn, tk):
    m_pad, k_pad = x_p.shape
    _, n_pad = w_p.shape
    assert m_pad % tm == 0 and n_pad % tn == 0 and k_pad % tk == 0

    grid_m, grid_n, grid_k = m_pad // tm, n_pad // tn, k_pad // tk

    # Footprint (double-buffered x/w + double-buffered out) stays well under
    # this for the default tile plans; 48 MiB keeps headroom under v7x's
    # 64 MiB physical VMEM while letting v5e/v6e use the same plan.
    compiler_params = pltpu.CompilerParams(
        # "parallel" shards across TensorCores only on multi-TC parts (v7x);
        # on single-TC v5e/v6e it is a no-op.
        dimension_semantics=(("parallel", "parallel") if grid_k == 1
                             else ("parallel", "parallel", "arbitrary")),
        vmem_limit_bytes=48 * 1024 * 1024,
    )

    if grid_k == 1:
        # Whole K in one pass: 2-D grid, no reduction axis, no init branch.
        return pl.pallas_call(
            _linear_kernel_single_k,
            out_shape=jax.ShapeDtypeStruct((m_pad, n_pad), jnp.float32),
            grid_spec=pltpu.PrefetchScalarGridSpec(
                num_scalar_prefetch=0,
                grid=(grid_m, grid_n),
                in_specs=[
                    pl.BlockSpec((tm, k_pad), lambda i, j: (i, 0)),   # x
                    pl.BlockSpec((k_pad, tn), lambda i, j: (0, j)),   # w
                    pl.BlockSpec((1, tn), lambda i, j: (0, j)),       # bias
                ],
                out_specs=pl.BlockSpec((tm, tn), lambda i, j: (i, j)),
            ),
            compiler_params=compiler_params,
        )(x_p, w_p, b_p)

    # K-split path: 3-D grid with K innermost; accumulate into the f32 output.
    return pl.pallas_call(
        _linear_kernel_k_reduce,
        out_shape=jax.ShapeDtypeStruct((m_pad, n_pad), jnp.float32),
        grid_spec=pltpu.PrefetchScalarGridSpec(
            num_scalar_prefetch=0,
            grid=(grid_m, grid_n, grid_k),
            in_specs=[
                pl.BlockSpec((tm, tk), lambda i, j, k: (i, k)),       # x
                pl.BlockSpec((tk, tn), lambda i, j, k: (k, j)),       # w
                pl.BlockSpec((1, tn), lambda i, j, k: (0, j)),        # bias
            ],
            out_specs=pl.BlockSpec((tm, tn), lambda i, j, k: (i, j)),
        ),
        compiler_params=compiler_params,
    )(x_p, w_p, b_p)


# ----------------------------------------------------------------------------
# Layer (parameters padded once at construction)
# ----------------------------------------------------------------------------
class LinearLayerPallas:
    """JAX/Pallas re-implementation of the PyTorch LinearLayer."""

    def __init__(self, input_dim, output_dim, key, *,
                 tn=None, tk=None, compute_dtype=jnp.float32):
        self.input_dim = int(input_dim)
        self.output_dim = int(output_dim)
        self.compute_dtype = compute_dtype

        scale = 1.0 * np.sqrt(6.0 / (self.input_dim + self.output_dim))
        kw, kb = jax.random.split(key)
        self.w = jax.random.uniform(
            kw, (self.input_dim, self.output_dim),
            minval=-scale, maxval=scale, dtype=jnp.float32)
        self.bias = jax.random.uniform(
            kb, (self.output_dim,),
            minval=-scale, maxval=scale, dtype=jnp.float32)

        # --- Tile plan for the fixed (K, N) = (input_dim, output_dim) side.
        k_pad = _round_up(self.input_dim, _LANE)
        n_pad = _round_up(self.output_dim, _LANE)
        if tn is None:
            # Up to 512 lanes (multiple of 256 for the v6e/v7x MXU when the
            # layer is that wide; still 128-aligned for v5e).
            tn = min(n_pad, 512)
        n_pad = _round_up(n_pad, tn)
        if tk is None:
            # If the whole padded K fits comfortably in VMEM alongside the
            # M/N tiles, keep it in one pass and drop the reduction grid axis.
            tk = k_pad if k_pad <= 2048 else 1024
        k_pad = _round_up(k_pad, tk)
        self.tn, self.tk = int(tn), int(tk)
        self.k_pad, self.n_pad = k_pad, n_pad

        # --- Pad weight & bias ONCE (not per forward).
        self.w_p = jnp.pad(
            self.w.astype(compute_dtype),
            ((0, k_pad - self.input_dim), (0, n_pad - self.output_dim)))
        # Bias stays f32: it is the accumulator initializer / epilogue add.
        self.b_p = jnp.pad(self.bias, (0, n_pad - self.output_dim)
                           ).reshape(1, n_pad)

    def __call__(self, x):
        batch, in_dim = x.shape
        assert in_dim == self.input_dim, "x inner dim must match input_dim"

        # M tile: only the sublane minimum for small batches; 256-row tiles
        # for big batches (padding waste bounded, per-step overhead amortized).
        m_pad = _round_up(batch, _SUBLANE)
        tm = m_pad if m_pad <= 512 else 256
        m_pad = _round_up(m_pad, tm)

        x_p = jnp.pad(x.astype(self.compute_dtype),
                      ((0, m_pad - batch), (0, self.k_pad - in_dim)))

        out_p = _linear_padded(x_p, self.w_p, self.b_p,
                               tm=int(tm), tn=self.tn, tk=self.tk)
        return out_p[:batch, :self.output_dim]


# ----------------------------------------------------------------------------
# Demo / correctness check
# ----------------------------------------------------------------------------
if __name__ == "__main__":
    key = jax.random.PRNGKey(0)
    k_param, k_x, k_param2, k_x2 = jax.random.split(key, 4)

    # 1) Small shapes consistent with the module: batch=2, hidden=32 -> out=4.
    #    Exercises the single-K-pass (2-D grid) path.
    batch, input_dim, output_dim = 2, 32, 4
    layer = LinearLayerPallas(input_dim, output_dim, k_param)
    x = jax.random.normal(k_x, (batch, input_dim), dtype=jnp.float32)

    out = jax.block_until_ready(layer(x))
    ref = (np.asarray(x, np.float64) @ np.asarray(layer.w, np.float64)
           + np.asarray(layer.bias, np.float64))
    np.testing.assert_allclose(np.asarray(out, np.float64), ref,
                               rtol=1e-5, atol=1e-5)

    # 2) Slightly larger layer with tk forced below K to exercise the
    #    K-reduction (3-D grid, accumulate-into-output) path.
    batch2, input_dim2, output_dim2 = 16, 512, 256
    layer2 = LinearLayerPallas(input_dim2, output_dim2, k_param2, tk=256)
    x2 = jax.random.normal(k_x2, (batch2, input_dim2), dtype=jnp.float32)

    out2 = jax.block_until_ready(layer2(x2))
    ref2 = (np.asarray(x2, np.float64) @ np.asarray(layer2.w, np.float64)
            + np.asarray(layer2.bias, np.float64))
    np.testing.assert_allclose(np.asarray(out2, np.float64), ref2,
                               rtol=1e-4, atol=1e-4)

    print("KERNEL_OK")
</pallas_src>

<mosaic_0001>
module attributes {stable_mosaic.version = 11 : i64} {
  func.func @_linear_kernel_single_k(%arg0: i32, %arg1: i32, %arg2: memref<8x128xf32, #tpu.memory_space<vmem>>, %arg3: memref<128x128xf32, #tpu.memory_space<vmem>>, %arg4: memref<1x128xf32, #tpu.memory_space<vmem>>, %arg5: memref<8x128xf32, #tpu.memory_space<vmem>>) attributes {dimension_semantics = [#tpu.dimension_semantics<parallel>, #tpu.dimension_semantics<parallel>], iteration_bounds = array<i64: 1, 1>, scalar_prefetch = 0 : i64, scratch_operands = 0 : i64, tpu.core_type = #tpu.core_type<tc>, window_params = [{transform_indices = @transform_0, window_bounds = array<i64: 8, 128>}, {transform_indices = @transform_1, window_bounds = array<i64: 128, 128>}, {transform_indices = @transform_2, window_bounds = array<i64: 1, 128>}, {transform_indices = @transform_3, window_bounds = array<i64: 8, 128>}]} {
    %c0 = arith.constant 0 : index
    %c0_0 = arith.constant 0 : index
    %0 = vector.load %arg2[%c0, %c0_0] : memref<8x128xf32, #tpu.memory_space<vmem>>, vector<8x128xf32>
    %c0_1 = arith.constant 0 : index
    %c0_2 = arith.constant 0 : index
    %1 = vector.load %arg3[%c0_1, %c0_2] : memref<128x128xf32, #tpu.memory_space<vmem>>, vector<128x128xf32>
    %cst = arith.constant dense<0.000000e+00> : vector<8x128xf32>
    %2 = tpu.matmul %0, %1, %cst {dimension_numbers = #tpu.dot_dimension_numbers<[1], [0], [0], [1], [0, 0, 1, 1], [], []>} : vector<8x128xf32>, vector<128x128xf32>, vector<8x128xf32> -> vector<8x128xf32>
    %c0_3 = arith.constant 0 : index
    %c0_4 = arith.constant 0 : index
    %3 = vector.load %arg4[%c0_3, %c0_4] : memref<1x128xf32, #tpu.memory_space<vmem>>, vector<1x128xf32>
    %4 = vector.broadcast %3 : vector<1x128xf32> to vector<8x128xf32>
    %5 = arith.addf %2, %4 : vector<8x128xf32>
    %c0_5 = arith.constant 0 : index
    %c0_6 = arith.constant 0 : index
    %6 = vector.load %arg5[%c0_5, %c0_6] : memref<8x128xf32, #tpu.memory_space<vmem>>, vector<8x128xf32>
    tpu.vector_store %arg5[%c0_5, %c0_6], %5 {strides = array<i32>} : memref<8x128xf32, #tpu.memory_space<vmem>>, vector<8x128xf32>,
    return
  }
  func.func @transform_0(%arg0: i32, %arg1: i32) -> (i32, i32) {
    %c0_i32 = arith.constant 0 : i32
    %c0_i32_0 = arith.constant 0 : i32
    return %arg0, %c0_i32 : i32, i32
  }
  func.func @transform_1(%arg0: i32, %arg1: i32) -> (i32, i32) {
    %c0_i32 = arith.constant 0 : i32
    %c0_i32_0 = arith.constant 0 : i32
    return %c0_i32, %arg1 : i32, i32
  }
  func.func @transform_2(%arg0: i32, %arg1: i32) -> (i32, i32) {
    %c0_i32 = arith.constant 0 : i32
    %c0_i32_0 = arith.constant 0 : i32
    return %c0_i32, %arg1 : i32, i32
  }
  func.func @transform_3(%arg0: i32, %arg1: i32) -> (i32, i32) {
    %c0_i32 = arith.constant 0 : i32
    return %arg0, %arg1 : i32, i32
  }
}

</mosaic_0001>

<llo_original>
// kernel: _linear_padded.1
$region0: #{_linear_padded.1}
  #allocation0 [shape = 'u32[]', space=smem, size = 0x4, offset = 0x4, fixed_abs, tag = 'smem constant byte address 0x4 - core index']
  #allocation1 [shape = 'u32[144,128]{1,0:T(1,128)}', space=vmem, size = 0x12000, scoped, tag = 'internal scratch']
  %s0 = inlined_call_operand.hbm [shape: f32[8,128], index: 0, kind: input, shape index: {}]
  %s1 = inlined_call_operand.hbm [shape: f32[128,128], index: 1, kind: input, shape index: {}]
  %s2 = inlined_call_operand.vmem [shape: f32[1,128], index: 2, kind: input, shape index: {}]
  %s3 = inlined_call_operand.hbm [shape: f32[8,128], index: 3, kind: output, shape index: {}]
  %s4 = sld [smem:[#allocation0]]
  $region30: #{_linear_padded.1} parent=0
    _
  %s6 = ssub.s32 1, %s4
  %s7 = scalar_select 0, %s6, %s4
  $region1: #{_linear_padded.1} parent=0
    #allocation2 [shape = 'u8[4096]{0}', space=vmem, size = 0x1000, scoped, tag = 'input window, operand 0, single buffered']
    #allocation3 [shape = 's32[1]{0}', space=sflag, size = 0x4, scoped, tag = 'scoped memory for _linear_padded.1']
    #allocation4 [shape = 's32[1]{0}', space=sflag, size = 0x4, scoped, tag = 'scoped memory for _linear_padded.1']
    #allocation5 [shape = 'u8[65536]{0}', space=vmem, size = 0x10000, scoped, tag = 'input window, operand 1, single buffered']
    #allocation6 [shape = 's32[1]{0}', space=sflag, size = 0x4, scoped, tag = 'scoped memory for _linear_padded.1']
    #allocation7 [shape = 'u8[4096]{0}', space=vmem, size = 0x1000, scoped, tag = 'output window, operand 0, single buffered']
    %8 = vsyncpa [#allocation3], 0
    %9 = vsyncpa [#allocation6], 0
    %10 = vsyncpa [#allocation4], 0
    // Predicated region
    $region2: #{_linear_padded.1} parent=1 // pred_check
      _
    $region3: #{_linear_padded.1} parent=1 // pred_check_branch
      %12 = sbr.rel (0) target = $region5
    $region4: #{_linear_padded.1} parent=1 // pred_region
      %s14 = ssub.s32 128, 128
      %15 = vsyncadd [#allocation3], %s14
      %s17 = sshll.u32 [#allocation2], 4
      %s18 = int_to_ptr.vmem [resolvable:$true] %s17
      %20 = dma.hbm_to_vmem [thread:$0]  %s0, 128, %s18, [#allocation3]
    $region5: #{_linear_padded.1} parent=1 // pred_fallthru
      _
    // Predicated region
    $region6: #{_linear_padded.1} parent=1 // pred_check
      _
    $region7: #{_linear_padded.1} parent=1 // pred_check_branch
      %22 = sbr.rel (0) target = $region9
    $region8: #{_linear_padded.1} parent=1 // pred_region
      %s24 = ssub.s32 2048, 2048
      %25 = vsyncadd [#allocation6], %s24
      %s26 = sshll.u32 [#allocation5], 4
      %s27 = int_to_ptr.vmem [resolvable:$true] %s26
      %32 = dma.hbm_to_vmem [thread:$0]  %s1, 2048, %s27, [#allocation6], 128, 128, 8
    $region9: #{_linear_padded.1} parent=1 // pred_fallthru
      _
    // Predicated region
    $region10: #{_linear_padded.1} parent=1 // pred_check
      _
    $region11: #{_linear_padded.1} parent=1 // pred_check_branch
      %34 = sbr.rel (0) target = $region13
    $region12: #{_linear_padded.1} parent=1 // pred_region
      _
    $region13: #{_linear_padded.1} parent=1 // pred_fallthru
      _
    // Predicated region
    $region14: #{_linear_padded.1} parent=1 // pred_check
      _
    $region15: #{_linear_padded.1} parent=1 // pred_check_branch
      %36 = sbr.rel (0) target = $region17
    $region16: #{_linear_padded.1} parent=1 // pred_region
      %37 = dma.done [#allocation3], 128
    $region17: #{_linear_padded.1} parent=1 // pred_fallthru
      _
    // Predicated region
    $region18: #{_linear_padded.1} parent=1 // pred_check
      _
    $region19: #{_linear_padded.1} parent=1 // pred_check_branch
      %39 = sbr.rel (0) target = $region21
    $region20: #{_linear_padded.1} parent=1 // pred_region
      %40 = dma.done [#allocation6], 2048
    $region21: #{_linear_padded.1} parent=1 // pred_fallthru
      _
    %v41 = vld [vmem:[#allocation2] sm:$0xff]
    %v42 = vld [vmem:[#allocation5] sm:$0xff]
    %v43 = vld [vmem:[#allocation5 + $0x8] sm:$0xff]
    %v44 = vld [vmem:[#allocation5 + $0x10] sm:$0xff]
    %v45 = vld [vmem:[#allocation5 + $0x18] sm:$0xff]
    %v46 = vld [vmem:[#allocation5 + $0x20] sm:$0xff]
    %v47 = vld [vmem:[#allocation5 + $0x28] sm:$0xff]
    %v48 = vld [vmem:[#allocation5 + $0x30] sm:$0xff]
    %v49 = vld [vmem:[#allocation5 + $0x38] sm:$0xff]
    %v50 = vld [vmem:[#allocation5 + $0x40] sm:$0xff]
    %v51 = vld [vmem:[#allocation5 + $0x48] sm:$0xff]
    %v52 = vld [vmem:[#allocation5 + $0x50] sm:$0xff]
    %v53 = vld [vmem:[#allocation5 + $0x58] sm:$0xff]
    %v54 = vld [vmem:[#allocation5 + $0x60] sm:$0xff]
    %v55 = vld [vmem:[#allocation5 + $0x68] sm:$0xff]
    %v56 = vld [vmem:[#allocation5 + $0x70] sm:$0xff]
    %v57 = vld [vmem:[#allocation5 + $0x78] sm:$0xff]
    %v58 = vld [vmem:[%s2] sm:$0x1]
    %v60 = vlaneseq
    %v61 = vshrl.u32 %v60, 7
    %v62 = vsub.s32 0, %v61
    %v63 = vrot.slane %v58, %v62
    %65 = vmatprep.subr.mxu0 0.0
    %66 = vmatpush1.msra.mxu0 %v42
    %67 = vmatprep.subr.mxu0 0.0
    %68 = vmatpush1.msra.mxu0 %v43
    %69 = vmatprep.subr.mxu0 0.0
    %70 = vmatpush1.msra.mxu0 %v44
    %71 = vmatprep.subr.mxu0 0.0
    %72 = vmatpush1.msra.mxu0 %v45
    %73 = vmatprep.subr.mxu0 0.0
    %74 = vmatpush1.msra.mxu0 %v46
    %75 = vmatprep.subr.mxu0 0.0
    %76 = vmatpush1.msra.mxu0 %v47
    %77 = vmatprep.subr.mxu0 0.0
    %78 = vmatpush1.msra.mxu0 %v48
    %79 = vmatprep.subr.mxu0 0.0
    %80 = vmatpush1.msra.mxu0 %v49
    %81 = vmatprep.subr.mxu0 0.0
    %82 = vmatpush1.msra.mxu0 %v50
    %83 = vmatprep.subr.mxu0 0.0
    %84 = vmatpush1.msra.mxu0 %v51
    %85 = vmatprep.subr.mxu0 0.0
    %86 = vmatpush1.msra.mxu0 %v52
    %87 = vmatprep.subr.mxu0 0.0
    %88 = vmatpush1.msra.mxu0 %v53
    %89 = vmatprep.subr.mxu0 0.0
    %90 = vmatpush1.msra.mxu0 %v54
    %91 = vmatprep.subr.mxu0 0.0
    %92 = vmatpush1.msra.mxu0 %v55
    %93 = vmatprep.subr.mxu0 0.0
    %94 = vmatpush1.msra.mxu0 %v56
    %95 = vmatprep.subr.mxu0 0.0
    %96 = vmatpush1.msra.mxu0 %v57
    %97 = vmatprep.subr.mxu0 0.0
    %98 = vmatpush1.msra.mxu0 0.0
    %99 = vmatprep.subr.mxu0 0.0
    %100 = vmatpush1.msra.mxu0 0.0
    %101 = vmatprep.subr.mxu0 0.0
    %102 = vmatpush1.msra.mxu0 0.0
    %103 = vmatprep.subr.mxu0 0.0
    %104 = vmatpush1.msra.mxu0 0.0
    %105 = vmatprep.subr.mxu0 0.0
    %106 = vmatpush1.msra.mxu0 0.0
    %107 = vmatprep.subr.mxu0 0.0
    %108 = vmatpush1.msra.mxu0 0.0
    %109 = vmatprep.subr.mxu0 0.0
    %110 = vmatpush1.msra.mxu0 0.0
    %111 = vmatprep.subr.mxu0 0.0
    %112 = vmatpush1.msra.mxu0 0.0
    %113 = vmatprep.subr.mxu0 0.0
    %114 = vmatpush1.msra.mxu0 0.0
    %115 = vmatprep.subr.mxu0 0.0
    %116 = vmatpush1.msra.mxu0 0.0
    %117 = vmatprep.subr.mxu0 0.0
    %118 = vmatpush1.msra.mxu0 0.0
    %119 = vmatprep.subr.mxu0 0.0
    %120 = vmatpush1.msra.mxu0 0.0
    %121 = vmatprep.subr.mxu0 0.0
    %122 = vmatpush1.msra.mxu0 0.0
    %123 = vmatprep.subr.mxu0 0.0
    %124 = vmatpush1.msra.mxu0 0.0
    %125 = vmatprep.subr.mxu0 0.0
    %126 = vmatpush1.msra.mxu0 0.0
    %127 = vmatprep.subr.mxu0 0.0
    %128 = vmatpush1.msra.mxu0 0.0
    %129 = vmatprep.mubr.f32.mxu0 0.0
    %130 = vmatmul.mubr.f32.gmra.mrb[0].mxu0 %v41
    %v131 = vpop.f32.mrb[0].mxu0
    %v132 = vadd.f32 %v63, %v131
    %v133 = vpop.f32.mrb[0].mxu0
    %134 = vdwg.mxu0
    %135 = vst [vmem:[#allocation7] sm:$0xff] %v132
    // Predicated region
    $region22: #{_linear_padded.1} parent=1 // pred_check
      _
    $region23: #{_linear_padded.1} parent=1 // pred_check_branch
      %137 = sbr.rel (0) target = $region25
    $region24: #{_linear_padded.1} parent=1 // pred_region
      %s139 = ssub.s32 128, 128
      %140 = vsyncadd [#allocation4], %s139
      %s142 = sshll.u32 [#allocation7], 4
      %s143 = int_to_ptr.vmem [resolvable:$true] %s142
      %145 = dma.vmem_to_hbm [thread:$0]  %s143, 128, %s3, [#allocation4]
    $region25: #{_linear_padded.1} parent=1 // pred_fallthru
      _
    // Predicated region
    $region26: #{_linear_padded.1} parent=1 // pred_check
      _
    $region27: #{_linear_padded.1} parent=1 // pred_check_branch
      %147 = sbr.rel (0) target = $region29
    $region28: #{_linear_padded.1} parent=1 // pred_region
      %148 = dma.done [#allocation4], 128
    $region29: #{_linear_padded.1} parent=1 // pred_fallthru
      _
    %149 = vsyncpa [#allocation3], 1
    %150 = vsyncpa [#allocation6], 1
    %151 = vsyncpa [#allocation4], 1

</llo_original>
